<compile_context>
chip_gen: v6e
topology: v6e:2x2x1
jax: 0.10.0
libtpu: 0.0.40
codegen_flags: <defaults>
</compile_context>

<pallas_src>
import functools

import jax
import jax.numpy as jnp
from jax.experimental import pallas as pl
from jax.experimental.pallas import tpu as pltpu


# ---------------------------------------------------------------------------
# Tiny one-off probe: pin down pltpu.roll's rotation convention (vs jnp.roll)
# so the depthwise tap shifts are correct across jax/Mosaic versions.
# ---------------------------------------------------------------------------
def _probe_roll_kernel(x_ref, o_ref):
    o_ref[...] = pltpu.roll(x_ref[...], 1, 1)


@functools.lru_cache(maxsize=None)
def _pltpu_roll_matches_jnp_roll():
    x = jnp.broadcast_to(jnp.arange(128, dtype=jnp.float32)[None, :], (8, 128))
    y = pl.pallas_call(
        _probe_roll_kernel,
        out_shape=jax.ShapeDtypeStruct((8, 128), jnp.float32))(x)
    return bool(jnp.allclose(y, jnp.roll(x, 1, axis=1)))


# ---------------------------------------------------------------------------
# Fused CHIMB kernel: one batch image per grid step, (C, H*W) layout.
# ---------------------------------------------------------------------------
def _chimb_kernel(inp_ref, w_in_ref, w_sq_ref, dw3_ref, dw5_ref, dw7_ref,
                  vc_ref, v2_ref, out_ref, *, H, W, C, eps, pad_flat,
                  mm_dtype, roll_sign):
    """CHIMB block for one image.

    inp_ref : (1, C, H*W)   input image, flattened spatial on lanes
    w_in_ref: (2, 2C, C)    [conv1, conv4]      (fused lo/hi halves)
    w_sq_ref: (4, C, C)     [conv3, lka.conv1, sca2.conv, conv6]
    dw3_ref : (2, 2C, 9)    [conv2, conv5]      (fused depthwise 3x3)
    dw5_ref : (C, 25)       LKA conv0 (5x5 depthwise)
    dw7_ref : (C, 49)       LKA conv_spatial (7x7 depthwise, dilation 3)
    vc_ref  : (C, 12)       per-channel vectors (column map in the wrapper)
    v2_ref  : (2C, 4)       [conv1_b, conv2_b, conv4_b, conv5_b]
    out_ref : (1, C, H*W)
    """
    f32 = jnp.float32
    HW = H * W
    HWp = HW + 2 * pad_flat

    x_in = inp_ref[0].astype(f32)                        # (C, HW)
    vc = vc_ref[...].astype(f32)                         # (C, 12)
    v2 = v2_ref[...].astype(f32)                         # (2C, 4)

    def vcol(i):                                         # (C, 1)
        return vc[:, i:i + 1]

    def v2col(i):                                        # (2C, 1)
        return v2[:, i:i + 1]

    # Column index of every flattened *padded* pixel (only interior values
    # matter).  Generated in-kernel -> no row/col index-plane inputs/DMAs.
    colp = (jax.lax.broadcasted_iota(jnp.int32, (1, HWp), 1) - pad_flat) % W

    _cmask = {}                                          # lazily built, ~10 total

    def col_mask(dw):                                    # validity of (col + dw)
        if dw not in _cmask:
            if dw > 0:
                _cmask[dw] = (colp < (W - dw)).astype(f32)
            else:
                _cmask[dw] = (colp >= (-dw)).astype(f32)
        return _cmask[dw]

    def layer_norm(x, w_col, b_col):                     # LayerNorm2d over channels
        mu = jnp.mean(x, axis=0, keepdims=True)
        var = jnp.mean(jnp.square(x - mu), axis=0, keepdims=True)
        return w_col * ((x - mu) * jax.lax.rsqrt(var + eps)) + b_col

    def conv1x1(w, x, b_col):                            # one deep MXU matmul
        return jnp.dot(w.astype(mm_dtype), x.astype(mm_dtype),
                       preferred_element_type=f32) + b_col

    def depthwise(x, wk, b_col, ks, dil):
        """'same'-padded depthwise conv on a (n_ch, HW) tile.

        The input is embedded once into a lane-aligned flat zero halo that
        covers the dilated-7x7 row reach.  Each tap is then one pltpu.roll
        (XLU) + per-channel FMA; only column-boundary masks are needed (the
        zero halo handles the row boundaries), applied once per column-offset
        group instead of once per tap.
        """
        n_ch = x.shape[0]
        zpad = jnp.zeros((n_ch, pad_flat), f32)
        xp = jnp.concatenate([zpad, x, zpad], axis=1)    # (n_ch, HWp), aligned
        half = (ks - 1) // 2
        acc = None
        for kw in range(ks):
            dw = (kw - half) * dil
            part = None
            for kh in range(ks):
                dh = (kh - half) * dil
                s = dh * W + dw                          # flat tap offset
                if s == 0:
                    t = xp
                else:
                    t = pltpu.roll(xp, (roll_sign * -s) % HWp, 1)
                w_tap = wk[:, kh * ks + kw:kh * ks + kw + 1]   # (n_ch, 1)
                contrib = t * w_tap
                part = contrib if part is None else part + contrib
            if dw != 0:                                  # one mask per dw group
                part = part * col_mask(dw)
            acc = part if acc is None else acc + part
        return acc[:, pad_flat:pad_flat + HW] + b_col

    def gelu(x):                                         # exact-erf GELU (A&S 7.1.26)
        z = x * 0.7071067811865476
        az = jnp.abs(z)
        den = 1.0 + 0.3275911 * az
        t = pl.reciprocal(den, approx=True)              # EUP, not a VALU divide
        t = t * (2.0 - den * t)                          # Newton step 1
        t = t * (2.0 - den * t)                          # Newton step 2
        poly = t * (0.254829592 + t * (-0.284496736 + t * (1.421413741 +
               t * (-1.453152027 + t * 1.061405429))))
        erf_abs = 1.0 - poly * jnp.exp(-az * az)
        erf_z = jnp.where(z >= 0.0, erf_abs, -erf_abs)
        return 0.5 * x * (1.0 + erf_z)

    # -------- branch 1: conv1 -> dw conv2 -> SimpleGate -> SCA -> conv3 -----
    h = layer_norm(x_in, vcol(0), vcol(1))                         # norm1
    t = conv1x1(w_in_ref[0], h, v2col(0))                          # conv1 (2C)
    t = depthwise(t, dw3_ref[0].astype(f32), v2col(1), 3, 1)       # conv2 (2C)
    x = t[:C] * t[C:]                                              # SimpleGate

    # sca2: adaptive-avg-pool(1) + 1x1, computed mean-first (tiny dot).
    pooled = jnp.mean(x, axis=1, keepdims=True)                    # (C, 1)
    sca2 = jnp.dot(w_sq_ref[2].astype(f32), pooled,
                   preferred_element_type=f32) + vcol(8)           # (C, 1)

    # sca1 = LKA(x) = x * conv1x1(dw7x7_dil3(dw5x5(x)))
    a = depthwise(x, dw5_ref[...].astype(f32), vcol(5), 5, 1)      # 5x5 dw
    a = depthwise(a, dw7_ref[...].astype(f32), vcol(6), 7, 3)      # 7x7 dw, dil 3
    a = conv1x1(w_sq_ref[1], a, vcol(7))                           # LKA 1x1
    sca1 = x * a

    x = sca2 * x + sca1
    x = conv1x1(w_sq_ref[0], x, vcol(4))                           # conv3
    y = x_in + x * vcol(10)                                        # + beta * x

    # -------- branch 2: conv4 -> dw conv5 -> gelu-gate -> conv6 -------------
    h = layer_norm(y, vcol(2), vcol(3))                            # norm2
    t = conv1x1(w_in_ref[1], h, v2col(2))                          # conv4 (2C)
    t = depthwise(t, dw3_ref[1].astype(f32), v2col(3), 3, 1)       # conv5 (2C)
    x = gelu(t[:C]) * t[C:]
    x = conv1x1(w_sq_ref[3], x, vcol(9))                           # conv6
    out = y + x * vcol(11)                                         # + gamma * x

    out_ref[0] = out.astype(out_ref.dtype)


# ---------------------------------------------------------------------------
# Wrapper: free reshapes + parameter packing only (no transpose / pad passes).
# ---------------------------------------------------------------------------
def chimb_forward(inp, params, *, eps=1e-6, matmul_dtype=jnp.float32):
    B, C, H, W = inp.shape
    HW = H * W
    # Lane-dense layout requires a 128-multiple flattened spatial extent.
    assert HW % 128 == 0, "pad H*W to a multiple of 128 in the caller"
    P = params
    C2 = 2 * C

    # Flat zero halo: must cover the dilated-7x7 row reach (9 rows) and be
    # lane-aligned so the in-kernel embed/extract are 128-aligned copies.
    pad_flat = ((9 * W + 127) // 128) * 128

    inp_flat = inp.reshape(B, C, HW)                     # free reshape

    w_in = jnp.stack([P["conv1_w"], P["conv4_w"]]).astype(matmul_dtype)
    w_sq = jnp.stack([P["conv3_w"], P["lka1_w"], P["sca2_w"],
                      P["conv6_w"]]).astype(matmul_dtype)
    dw3 = jnp.stack([P["conv2_w"].reshape(C2, 9),
                     P["conv5_w"].reshape(C2, 9)])
    dw5 = P["lka0_w"].reshape(C, 25)
    dw7 = P["lka_sp_w"].reshape(C, 49)
    vecC = jnp.stack([
        P["norm1_w"], P["norm1_b"], P["norm2_w"], P["norm2_b"],    # 0..3
        P["conv3_b"], P["lka0_b"], P["lka_sp_b"], P["lka1_b"],     # 4..7
        P["sca2_b"], P["conv6_b"], P["beta"], P["gamma"],          # 8..11
    ], axis=1)                                                     # (C, 12)
    vec2C = jnp.stack([P["conv1_b"], P["conv2_b"],
                       P["conv4_b"], P["conv5_b"]], axis=1)        # (2C, 4)

    roll_sign = 1 if _pltpu_roll_matches_jnp_roll() else -1

    kernel = functools.partial(_chimb_kernel, H=H, W=W, C=C, eps=eps,
                               pad_flat=pad_flat, mm_dtype=matmul_dtype,
                               roll_sign=roll_sign)

    out_flat = pl.pallas_call(
        kernel,
        out_shape=jax.ShapeDtypeStruct((B, C, HW), inp.dtype),
        grid=(B,),
        in_specs=[
            pl.BlockSpec((1, C, HW), lambda b: (b, 0, 0)),     # input image
            pl.BlockSpec((2, C2, C), lambda b: (0, 0, 0)),     # conv1 / conv4
            pl.BlockSpec((4, C, C), lambda b: (0, 0, 0)),      # conv3/lka1/sca2/conv6
            pl.BlockSpec((2, C2, 9), lambda b: (0, 0, 0)),     # conv2 / conv5 dw3x3
            pl.BlockSpec((C, 25), lambda b: (0, 0)),           # LKA 5x5 dw
            pl.BlockSpec((C, 49), lambda b: (0, 0)),           # LKA 7x7 dw (dil 3)
            pl.BlockSpec((C, 12), lambda b: (0, 0)),           # C-length vectors
            pl.BlockSpec((C2, 4), lambda b: (0, 0)),           # 2C-length biases
        ],
        out_specs=pl.BlockSpec((1, C, HW), lambda b: (b, 0, 0)),
        compiler_params=pltpu.CompilerParams(
            dimension_semantics=("parallel",),
            vmem_limit_bytes=64 * 1024 * 1024),
    )(inp_flat, w_in, w_sq, dw3, dw5, dw7, vecC, vec2C)

    return out_flat.reshape(B, C, H, W)


# ---------------------------------------------------------------------------
# Pure-JAX reference (mirrors the PyTorch CHIMB forward exactly)
# ---------------------------------------------------------------------------
def reference(inp, P, *, eps=1e-6):
    def conv1x1(x, w, b):
        return jnp.einsum("bchw,oc->bohw", x, w) + b[None, :, None, None]

    def dwconv(x, w, b, dil):
        k = w.shape[-1]
        pad = (k - 1) // 2 * dil
        y = jax.lax.conv_general_dilated(
            x, w[:, None, :, :], window_strides=(1, 1),
            padding=((pad, pad), (pad, pad)), rhs_dilation=(dil, dil),
            dimension_numbers=("NCHW", "OIHW", "NCHW"),
            feature_group_count=x.shape[1])
        return y + b[None, :, None, None]

    def layer_norm(x, w, b):
        mu = jnp.mean(x, axis=1, keepdims=True)
        var = jnp.mean((x - mu) ** 2, axis=1, keepdims=True)
        y = (x - mu) / jnp.sqrt(var + eps)
        return w[None, :, None, None] * y + b[None, :, None, None]

    x = layer_norm(inp, P["norm1_w"], P["norm1_b"])
    x = conv1x1(x, P["conv1_w"], P["conv1_b"])
    x = dwconv(x, P["conv2_w"], P["conv2_b"], 1)
    x1, x2 = jnp.split(x, 2, axis=1)
    x = x1 * x2
    pooled = jnp.mean(x, axis=(2, 3), keepdims=True)
    sca2 = (jnp.einsum("bcij,oc->boij", pooled, P["sca2_w"])
            + P["sca2_b"][None, :, None, None])
    a = dwconv(x, P["lka0_w"], P["lka0_b"], 1)
    a = dwconv(a, P["lka_sp_w"], P["lka_sp_b"], 3)
    a = conv1x1(a, P["lka1_w"], P["lka1_b"])
    sca1 = x * a
    x = sca2 * x + sca1
    x = conv1x1(x, P["conv3_w"], P["conv3_b"])
    y = inp + x * P["beta"][None, :, None, None]
    x = layer_norm(y, P["norm2_w"], P["norm2_b"])
    x = conv1x1(x, P["conv4_w"], P["conv4_b"])
    x = dwconv(x, P["conv5_w"], P["conv5_b"], 1)
    x1, x2 = jnp.split(x, 2, axis=1)
    x = jax.nn.gelu(x1, approximate=False) * x2
    x = conv1x1(x, P["conv6_w"], P["conv6_b"])
    return y + x * P["gamma"][None, :, None, None]


if __name__ == "__main__":
    B, C, H, W = 2, 4, 16, 16          # c=4, DW_Expand=2 -> dw_channel=8
    C2 = 2 * C

    key = jax.random.PRNGKey(0)
    keys = jax.random.split(key, 30)

    def rnd(i, shape, scale=0.2):
        return scale * jax.random.normal(keys[i], shape, jnp.float32)

    params = {
        "norm1_w": 1.0 + rnd(0, (C,), 0.1), "norm1_b": rnd(1, (C,), 0.1),
        "norm2_w": 1.0 + rnd(2, (C,), 0.1), "norm2_b": rnd(3, (C,), 0.1),
        "conv1_w": rnd(4, (C2, C)),   "conv1_b": rnd(5, (C2,), 0.1),
        "conv2_w": rnd(6, (C2, 3, 3)), "conv2_b": rnd(7, (C2,), 0.1),
        "conv3_w": rnd(8, (C, C)),    "conv3_b": rnd(9, (C,), 0.1),
        "lka0_w":  rnd(10, (C, 5, 5)), "lka0_b": rnd(11, (C,), 0.1),
        "lka_sp_w": rnd(12, (C, 7, 7)), "lka_sp_b": rnd(13, (C,), 0.1),
        "lka1_w":  rnd(14, (C, C)),   "lka1_b": rnd(15, (C,), 0.1),
        "sca2_w":  rnd(16, (C, C)),   "sca2_b": rnd(17, (C,), 0.1),
        "conv4_w": rnd(18, (C2, C)),  "conv4_b": rnd(19, (C2,), 0.1),
        "conv5_w": rnd(20, (C2, 3, 3)), "conv5_b": rnd(21, (C2,), 0.1),
        "conv6_w": rnd(22, (C, C)),   "conv6_b": rnd(23, (C,), 0.1),
        # PyTorch initializes beta/gamma to zeros; use nonzero values so the
        # residual scaling paths are actually exercised by the check.
        "beta": rnd(24, (C,), 0.5), "gamma": rnd(25, (C,), 0.5),
    }
    inp = jax.random.normal(keys[26], (B, C, H, W), jnp.float32)

    ref = reference(inp, params)

    # f32-matmul path: exact check against the reference.
    out = chimb_forward(inp, params, matmul_dtype=jnp.float32)
    out = jax.block_until_ready(out)
    assert out.shape == (B, C, H, W), out.shape
    err = float(jnp.max(jnp.abs(out - ref)))
    assert jnp.allclose(out, ref, atol=1e-4, rtol=1e-4), err

    # bf16-matmul path (production MXU dtype): looser tolerance.
    out_bf = chimb_forward(inp, params, matmul_dtype=jnp.bfloat16)
    out_bf = jax.block_until_ready(out_bf)
    err_bf = float(jnp.max(jnp.abs(out_bf - ref)))
    assert jnp.allclose(out_bf, ref, atol=5e-2, rtol=5e-2), err_bf

    print("KERNEL_OK")
</pallas_src>

<mosaic_0001>
module attributes {stable_mosaic.version = 11 : i64} {
  func.func @_probe_roll_kernel(%arg0: memref<8x128xf32, #tpu.memory_space<vmem>>, %arg1: memref<8x128xf32, #tpu.memory_space<vmem>>) attributes {dimension_semantics = [], scalar_prefetch = 0 : i64, scratch_operands = 0 : i64, tpu.core_type = #tpu.core_type<tc>} {
    %c0 = arith.constant 0 : index
    %c0_0 = arith.constant 0 : index
    %0 = vector.load %arg0[%c0, %c0_0] : memref<8x128xf32, #tpu.memory_space<vmem>>, vector<8x128xf32>
    %c1_i32 = arith.constant 1 : i32
    %1 = tpu.dynamic_rotate %0 by %c1_i32 dim 1 : vector<8x128xf32>, i32 -> vector<8x128xf32>
    %c0_1 = arith.constant 0 : index
    %c0_2 = arith.constant 0 : index
    %2 = vector.load %arg1[%c0_1, %c0_2] : memref<8x128xf32, #tpu.memory_space<vmem>>, vector<8x128xf32>
    tpu.vector_store %arg1[%c0_1, %c0_2], %1 {strides = array<i32>} : memref<8x128xf32, #tpu.memory_space<vmem>>, vector<8x128xf32>,
    return
  }
}

</mosaic_0001>

<llo_original>
// kernel: tpu_custom_call.1
$region0: #{tpu_custom_call.1}
  #allocation0 [shape = 'u32[]', space=smem, size = 0x4, offset = 0x4, fixed_abs, tag = 'smem constant byte address 0x4 - core index']
  #allocation1 [shape = 'u32[144,128]{1,0:T(1,128)}', space=vmem, size = 0x12000, scoped, tag = 'internal scratch']
  %s0 = inlined_call_operand.hbm [shape: f32[8,128], index: 0, kind: input, shape index: {}]
  %s1 = inlined_call_operand.hbm [shape: f32[8,128], index: 1, kind: output, shape index: {}]
  %s2 = sld [smem:[#allocation0]]
  $region18: #{tpu_custom_call.1} parent=0
    _
  %s4 = ssub.s32 1, %s2
  %s5 = scalar_select 0, %s4, %s2
  $region1: #{tpu_custom_call.1} parent=0
    #allocation2 [shape = 'u8[4096]{0}', space=vmem, size = 0x1000, scoped, tag = 'input window, operand 0, single buffered']
    #allocation3 [shape = 's32[1]{0}', space=sflag, size = 0x4, scoped, tag = 'scoped memory for tpu_custom_call.1']
    #allocation4 [shape = 's32[1]{0}', space=sflag, size = 0x4, scoped, tag = 'scoped memory for tpu_custom_call.1']
    #allocation5 [shape = 'u8[4096]{0}', space=vmem, size = 0x1000, scoped, tag = 'output window, operand 0, single buffered']
    %6 = vsyncpa [#allocation3], 0
    %7 = vsyncpa [#allocation4], 0
    // Predicated region
    $region2: #{tpu_custom_call.1} parent=1 // pred_check
      _
    $region3: #{tpu_custom_call.1} parent=1 // pred_check_branch
      %9 = sbr.rel (0) target = $region5
    $region4: #{tpu_custom_call.1} parent=1 // pred_region
      %s11 = ssub.s32 128, 128
      %12 = vsyncadd [#allocation3], %s11
      %s14 = sshll.u32 [#allocation2], 4
      %s15 = int_to_ptr.vmem [resolvable:$true] %s14
      %17 = dma.hbm_to_vmem [thread:$0]  %s0, 128, %s15, [#allocation3]
    $region5: #{tpu_custom_call.1} parent=1 // pred_fallthru
      _
    // Predicated region
    $region6: #{tpu_custom_call.1} parent=1 // pred_check
      _
    $region7: #{tpu_custom_call.1} parent=1 // pred_check_branch
      %19 = sbr.rel (0) target = $region9
    $region8: #{tpu_custom_call.1} parent=1 // pred_region
      %20 = dma.done [#allocation3], 128
    $region9: #{tpu_custom_call.1} parent=1 // pred_fallthru
      _
    %v21 = vld [vmem:[#allocation2] sm:$0xff]
    %22 = vrot.lane.b32.xlu0 %v21, 1
    %v23 = vpop.permute.xlu0 %22
    %24 = vst [vmem:[#allocation5] sm:$0xff] %v23
    // Predicated region
    $region10: #{tpu_custom_call.1} parent=1 // pred_check
      _
    $region11: #{tpu_custom_call.1} parent=1 // pred_check_branch
      %26 = sbr.rel (0) target = $region13
    $region12: #{tpu_custom_call.1} parent=1 // pred_region
      %s28 = ssub.s32 128, 128
      %29 = vsyncadd [#allocation4], %s28
      %s31 = sshll.u32 [#allocation5], 4
      %s32 = int_to_ptr.vmem [resolvable:$true] %s31
      %34 = dma.vmem_to_hbm [thread:$0]  %s32, 128, %s1, [#allocation4]
    $region13: #{tpu_custom_call.1} parent=1 // pred_fallthru
      _
    // Predicated region
    $region14: #{tpu_custom_call.1} parent=1 // pred_check
      _
    $region15: #{tpu_custom_call.1} parent=1 // pred_check_branch
      %36 = sbr.rel (0) target = $region17
    $region16: #{tpu_custom_call.1} parent=1 // pred_region
      %37 = dma.done [#allocation4], 128
    $region17: #{tpu_custom_call.1} parent=1 // pred_fallthru
      _
    %38 = vsyncpa [#allocation3], 1
    %39 = vsyncpa [#allocation4], 1

</llo_original>
